<compile_context>
chip_gen: v7x
topology: tpu7x:2x2x1
jax: 0.10.0
libtpu: 0.0.40
codegen_flags: <defaults>
</compile_context>

<pallas_src>
import functools
import math

import jax
import jax.numpy as jnp
import numpy as np
from jax.experimental import pallas as pl
from jax.experimental.pallas import tpu as pltpu

LOG_2PI = math.log(2.0 * math.pi)


def _round_up(x, m):
    return ((x + m - 1) // m) * m


def mappo_kernel(s_ref, o_ref, oa_ref, a_ref,
                 w1_ref, b1_ref, w2_ref, b2_ref, std_ref,
                 mean_ref, logp_ref, val_ref,
                 *, min_std, scale, S, SO, AO, A):
    """Fused MAPPO actor+critic forward for one batch tile.

    s_ref   : (TB, S)     agent_state              (stream dtype: f32 or bf16)
    o_ref   : (TB, SO)    other_agent_states       (stream dtype)
    oa_ref  : (TB, AO)    other_agent_actions      (stream dtype)
    a_ref   : (TB, A)     action (f32; reused for layer-1 block AND log_prob)
    w1_ref  : (K, 2H)     [actor-L1 (zero rows below S) | critic-L1], K=S+SO+AO+A
    b1_ref  : (1, 2H)     [actor b1 | critic b1]                     (f32)
    w2_ref  : (2H, A+1)   block-diagonal [actor head | critic head]  (f32)
    b2_ref  : (1, A+1)    [actor b2 | critic b2]                     (f32)
    std_ref : (1, A)      raw std parameter                          (f32)
    mean_ref: (TB, A)     tanh actor mean
    logp_ref: (TB, A)     Normal(mean, std).log_prob(action)
    val_ref : (TB, 1)     critic value
    """
    cdt = w1_ref.dtype
    act = a_ref[...]                                      # f32, reused below

    # ---- fused layer 1: four accumulating MXU pushes against static row-slices
    #      of the resident weight slab (no wrapper-side concatenate needed). ----
    z1 = jnp.dot(s_ref[...], w1_ref[0:S, :],
                 preferred_element_type=jnp.float32)
    z1 = z1 + jnp.dot(o_ref[...], w1_ref[S:S + SO, :],
                      preferred_element_type=jnp.float32)
    z1 = z1 + jnp.dot(oa_ref[...], w1_ref[S + SO:S + SO + AO, :],
                      preferred_element_type=jnp.float32)
    z1 = z1 + jnp.dot(act.astype(cdt), w1_ref[S + SO + AO:S + SO + AO + A, :],
                      preferred_element_type=jnp.float32)
    z1 = jnp.maximum(z1 + b1_ref[...], 0.0)               # (TB, 2H) relu, f32

    # ---- fused layer 2: one block-diagonal push for both heads (f32). ----
    z2 = (jnp.dot(z1, w2_ref[...], preferred_element_type=jnp.float32)
          + b2_ref[...])                                  # (TB, A+1)
    mean = jnp.tanh(z2[:, :A])                            # actor: tanh head
    value = z2[:, A:A + 1]                                # critic: linear head

    # ---- Normal(mean, std).log_prob(action); std math stays on the (1,A) row ----
    std = jnp.clip(std_ref[...], min_std, scale)          # F.hardtanh(std, min, max)
    log_std = jnp.log(std)
    neg_half_inv_var = -0.5 / (std * std)                 # row-level reciprocal
    diff = act - mean
    logp = diff * diff * neg_half_inv_var - (log_std + 0.5 * LOG_2PI)

    mean_ref[...] = mean
    logp_ref[...] = logp
    val_ref[...] = value


def fuse_mappo_params(params, stream_dtype=jnp.float32):
    """Build the fused layer-1 / layer-2 weight slabs once (static, zero per-call
    cost). `stream_dtype` is the dtype of the batch-streamed activations and w1
    (f32 or bf16); layer-2 / biases / std stay f32 so all math past layer 1 is f32."""
    S, H = params["aw1"].shape
    SO = params["cw1_o"].shape[0]
    AO = params["cw1_oa"].shape[0]
    A = params["cw1_a"].shape[0]
    K = S + SO + AO + A
    Aout = params["aw2"].shape[1]

    # layer 1: columns 0:H -> actor (only the S state rows are non-zero),
    #          columns H:2H -> critic (all K rows = concat of its 4 blocks).
    w1_actor = jnp.concatenate(
        [params["aw1"], jnp.zeros((K - S, H), jnp.float32)], axis=0)
    w1_critic = jnp.concatenate(
        [params["cw1_s"], params["cw1_o"], params["cw1_oa"], params["cw1_a"]],
        axis=0)
    w1 = jnp.concatenate([w1_actor, w1_critic], axis=1).astype(stream_dtype)
    b1 = jnp.concatenate([params["ab1"], params["cb1"]], axis=1)   # (1, 2H)

    # layer 2: block-diagonal — actor hidden (0:H) -> mean lanes 0:A,
    #                           critic hidden (H:2H) -> value lane A.
    w2 = jnp.zeros((2 * H, Aout + 1), jnp.float32)
    w2 = w2.at[:H, :Aout].set(params["aw2"])
    w2 = w2.at[H:, Aout:].set(params["cw2"])
    b2 = jnp.concatenate([params["ab2"], params["cb2"]], axis=1)   # (1, A+1)

    return {"w1": w1, "b1": b1, "w2": w2, "b2": b2, "std": params["std"]}


def mappo_forward(agent_state, other_agent_states, other_agent_actions, action,
                  fused, *, min_std=0.05, scale=1.0, block_b=2048):
    assert min_std > 0 and scale >= 0, (min_std, scale)
    B, S = agent_state.shape
    SO = other_agent_states.shape[1]
    AO = other_agent_actions.shape[1]
    A = action.shape[1]
    K, H2 = fused["w1"].shape
    assert K == S + SO + AO + A
    cdt = fused["w1"].dtype                 # stream dtype of state inputs / w1

    # Wide state streams are expected to already be stored in `cdt` (astype is a
    # no-op then). The narrow action stream stays f32 since it feeds log_prob.
    s_in = agent_state.astype(cdt)
    o_in = other_agent_states.astype(cdt)
    oa_in = other_agent_actions.astype(cdt)
    a_in = action.astype(jnp.float32)

    # Batch tile: >= 2 grid steps whenever B >= 16 so both v7x TensorCores get
    # work; cap at block_b (v5e/v6e: sweep 2048-8192, v7x: keep 2048-4096).
    mult = 16 if cdt == jnp.bfloat16 else 8
    if B < 2 * mult:
        TB = B                              # single block == full batch dim (OK)
    else:
        TB = min(block_b, _round_up(pl.cdiv(B, 2), mult))
    grid_b = pl.cdiv(B, TB)                 # ragged last block: OOB reads are
                                            # unspecified, OOB writes masked;
                                            # rows are independent -> safe.

    # Explicit scoped-VMEM limit sized from the double-buffered tile footprint
    # (all feature dims lane-pad to 128 in VMEM); fixes v5e's 16 MiB default.
    lane = 128
    in_bytes = TB * lane * (3 * jnp.dtype(cdt).itemsize + 4)
    out_bytes = 3 * TB * lane * 4
    w_bytes = (_round_up(K, 8) * _round_up(H2, lane) * jnp.dtype(cdt).itemsize
               + 3 * _round_up(H2, 8) * lane * 4)
    vmem_limit = max(int(1.25 * 2 * (in_bytes + out_bytes + w_bytes)) + (1 << 20),
                     32 << 20)

    kernel = functools.partial(mappo_kernel, min_std=float(min_std),
                               scale=float(scale), S=S, SO=SO, AO=AO, A=A)

    mean, log_probs, value = pl.pallas_call(
        kernel,
        out_shape=(jax.ShapeDtypeStruct((B, A), jnp.float32),
                   jax.ShapeDtypeStruct((B, A), jnp.float32),
                   jax.ShapeDtypeStruct((B, 1), jnp.float32)),
        grid_spec=pltpu.PrefetchScalarGridSpec(
            num_scalar_prefetch=0,
            grid=(grid_b,),
            in_specs=[
                pl.BlockSpec((TB, S), lambda i: (i, 0)),       # agent_state
                pl.BlockSpec((TB, SO), lambda i: (i, 0)),      # other_states
                pl.BlockSpec((TB, AO), lambda i: (i, 0)),      # other_actions
                pl.BlockSpec((TB, A), lambda i: (i, 0)),       # action
                pl.BlockSpec((K, H2), lambda i: (0, 0)),       # w1 (resident)
                pl.BlockSpec((1, H2), lambda i: (0, 0)),       # b1
                pl.BlockSpec((H2, A + 1), lambda i: (0, 0)),   # w2
                pl.BlockSpec((1, A + 1), lambda i: (0, 0)),    # b2
                pl.BlockSpec((1, A), lambda i: (0, 0)),        # std
            ],
            out_specs=(
                pl.BlockSpec((TB, A), lambda i: (i, 0)),       # mean
                pl.BlockSpec((TB, A), lambda i: (i, 0)),       # log_prob
                pl.BlockSpec((TB, 1), lambda i: (i, 0)),       # value
            ),
        ),
        # NOTE: once TB is large, pipeline_mode=pl.Buffered(3) on the
        # batch-streamed in/out specs is worth a 2-vs-3 sweep (hides DMA jitter).
        compiler_params=pltpu.CompilerParams(
            dimension_semantics=("parallel",),
            vmem_limit_bytes=vmem_limit),
    )(s_in, o_in, oa_in, a_in,
      fused["w1"], fused["b1"], fused["w2"], fused["b2"], fused["std"])

    # entropy depends only on std (broadcast over batch) -> compute once outside
    # the kernel: mean over (B, A) equals mean over the (1, A) std row.
    std = jnp.clip(fused["std"], min_std, scale)
    entropy = jnp.mean(0.5 + 0.5 * LOG_2PI + jnp.log(std))

    # forward returns (action, log_probs, dist_entropy, critic_value);
    # action.ndim > 1 with both dims > 1 => .squeeze() is a no-op.
    return action, log_probs, entropy, value, mean


def reference_forward(agent_state, other_agent_states, other_agent_actions, action,
                      params, *, min_std=0.05, scale=1.0):
    h = jnp.maximum(agent_state @ params["aw1"] + params["ab1"], 0.0)
    mean = jnp.tanh(h @ params["aw2"] + params["ab2"])
    std = jnp.clip(params["std"], min_std, scale)
    logp = (-0.5 * (action - mean) ** 2 / (std * std)
            - jnp.log(std) - 0.5 * LOG_2PI)
    ent = jnp.mean(jnp.broadcast_to(0.5 + 0.5 * LOG_2PI + jnp.log(std), mean.shape))
    cat_w = jnp.concatenate(
        [params["cw1_s"], params["cw1_o"], params["cw1_oa"], params["cw1_a"]], axis=0)
    cat_x = jnp.concatenate(
        [agent_state, other_agent_states, other_agent_actions, action], axis=1)
    ch = jnp.maximum(cat_x @ cat_w + params["cb1"], 0.0)
    value = ch @ params["cw2"] + params["cb2"]
    return mean, logp, ent, value


if __name__ == "__main__":
    # Small shapes: state 32, other agents (states 64, actions 8), action_size 4,
    # hidden 32; batch 8 (single grid step) and 40 (2 grid steps, ragged last).
    S, SO, AO, A, H = 32, 64, 8, 4, 32
    INITIAL_STD = 0.2

    key = jax.random.PRNGKey(0)
    ks = jax.random.split(key, 20)

    def init(k, shape, fan_in):
        return jax.random.normal(k, shape, jnp.float32) / math.sqrt(fan_in)

    params = {
        # actor MLP
        "aw1": init(ks[0], (S, H), S),
        "ab1": init(ks[1], (1, H), S),
        "aw2": init(ks[2], (H, A), H),
        "ab2": init(ks[3], (1, A), H),
        # critic MLP; first layer split per concatenated input block
        "cw1_s": init(ks[4], (S, H), S + SO + AO + A),
        "cw1_o": init(ks[5], (SO, H), S + SO + AO + A),
        "cw1_oa": init(ks[6], (AO, H), S + SO + AO + A),
        "cw1_a": init(ks[7], (A, H), S + SO + AO + A),
        "cb1": init(ks[8], (1, H), S + SO + AO + A),
        "cw2": init(ks[9], (H, 1), H),
        "cb2": init(ks[10], (1, 1), H),
        # nn.Parameter(torch.ones(1, action_size) * initial_std)
        "std": jnp.ones((1, A), jnp.float32) * INITIAL_STD,
    }

    # Fuse once at init time (static; not part of the per-call path).
    fused_f32 = jax.tree_util.tree_map(
        jax.block_until_ready, fuse_mappo_params(params, jnp.float32))
    fused_bf16 = jax.tree_util.tree_map(
        jax.block_until_ready, fuse_mappo_params(params, jnp.bfloat16))

    def make_inputs(k, B):
        k1, k2, k3, k4 = jax.random.split(k, 4)
        return (jax.random.normal(k1, (B, S), jnp.float32),
                jax.random.normal(k2, (B, SO), jnp.float32),
                jax.random.normal(k3, (B, AO), jnp.float32),
                jnp.clip(jax.random.normal(k4, (B, A), jnp.float32), -1.0, 1.0))

    # ---- f32 streaming: B=8 (single tile) and B=40 (2 tiles, ragged last) ----
    for idx, B in enumerate((8, 40)):
        st, ost, oac, act = make_inputs(ks[11 + idx], B)
        out = mappo_forward(st, ost, oac, act, fused_f32, min_std=0.05, scale=1.0)
        jax.block_until_ready(out)
        _, log_probs, entropy, value, mean = out
        rm, rl, re, rv = reference_forward(st, ost, oac, act, params,
                                           min_std=0.05, scale=1.0)
        np.testing.assert_allclose(np.asarray(mean), np.asarray(rm),
                                   rtol=1e-5, atol=1e-5)
        np.testing.assert_allclose(np.asarray(log_probs), np.asarray(rl),
                                   rtol=1e-5, atol=1e-5)
        np.testing.assert_allclose(float(entropy), float(re), rtol=1e-5, atol=1e-5)
        np.testing.assert_allclose(np.asarray(value), np.asarray(rv),
                                   rtol=1e-4, atol=1e-4)

    # ---- bf16 streaming (rollouts stored in bf16): B=40, 2 tiles, ragged ----
    st, ost, oac, act = make_inputs(ks[15], 40)
    st_b = st.astype(jnp.bfloat16)
    ost_b = ost.astype(jnp.bfloat16)
    oac_b = oac.astype(jnp.bfloat16)
    out = mappo_forward(st_b, ost_b, oac_b, act, fused_bf16,
                        min_std=0.05, scale=1.0)
    jax.block_until_ready(out)
    _, log_probs, entropy, value, mean = out
    rm, rl, re, rv = reference_forward(st_b.astype(jnp.float32),
                                       ost_b.astype(jnp.float32),
                                       oac_b.astype(jnp.float32), act, params,
                                       min_std=0.05, scale=1.0)
    np.testing.assert_allclose(np.asarray(mean), np.asarray(rm),
                               rtol=5e-2, atol=5e-2)
    np.testing.assert_allclose(np.asarray(log_probs), np.asarray(rl),
                               rtol=5e-2, atol=5e-2)
    np.testing.assert_allclose(float(entropy), float(re), rtol=1e-5, atol=1e-5)
    np.testing.assert_allclose(np.asarray(value), np.asarray(rv),
                               rtol=5e-2, atol=5e-2)

    print("KERNEL_OK")
</pallas_src>

<mosaic_0001>
module attributes {stable_mosaic.version = 11 : i64} {
  func.func @mappo_kernel(%arg0: i32, %arg1: memref<8x32xf32, #tpu.memory_space<vmem>>, %arg2: memref<8x64xf32, #tpu.memory_space<vmem>>, %arg3: memref<8x8xf32, #tpu.memory_space<vmem>>, %arg4: memref<8x4xf32, #tpu.memory_space<vmem>>, %arg5: memref<108x64xf32, #tpu.memory_space<vmem>>, %arg6: memref<1x64xf32, #tpu.memory_space<vmem>>, %arg7: memref<64x5xf32, #tpu.memory_space<vmem>>, %arg8: memref<1x5xf32, #tpu.memory_space<vmem>>, %arg9: memref<1x4xf32, #tpu.memory_space<vmem>>, %arg10: memref<8x4xf32, #tpu.memory_space<vmem>>, %arg11: memref<8x4xf32, #tpu.memory_space<vmem>>, %arg12: memref<8x1xf32, #tpu.memory_space<vmem>>) attributes {dimension_semantics = [#tpu.dimension_semantics<parallel>], iteration_bounds = array<i64: 1>, scalar_prefetch = 0 : i64, scratch_operands = 0 : i64, tpu.core_type = #tpu.core_type<tc>, window_params = [{transform_indices = @transform_0, window_bounds = array<i64: 8, 32>}, {transform_indices = @transform_1, window_bounds = array<i64: 8, 64>}, {transform_indices = @transform_2, window_bounds = array<i64: 8, 8>}, {transform_indices = @transform_3, window_bounds = array<i64: 8, 4>}, {pipeline_mode = #tpu.pipeline_mode<synchronous>, transform_indices = @transform_4, window_bounds = array<i64: 108, 64>}, {pipeline_mode = #tpu.pipeline_mode<synchronous>, transform_indices = @transform_5, window_bounds = array<i64: 1, 64>}, {pipeline_mode = #tpu.pipeline_mode<synchronous>, transform_indices = @transform_6, window_bounds = array<i64: 64, 5>}, {pipeline_mode = #tpu.pipeline_mode<synchronous>, transform_indices = @transform_7, window_bounds = array<i64: 1, 5>}, {pipeline_mode = #tpu.pipeline_mode<synchronous>, transform_indices = @transform_8, window_bounds = array<i64: 1, 4>}, {transform_indices = @transform_9, window_bounds = array<i64: 8, 4>}, {transform_indices = @transform_10, window_bounds = array<i64: 8, 4>}, {transform_indices = @transform_11, window_bounds = array<i64: 8, 1>}]} {
    %c0 = arith.constant 0 : index
    %c0_0 = arith.constant 0 : index
    %0 = vector.load %arg4[%c0, %c0_0] : memref<8x4xf32, #tpu.memory_space<vmem>>, vector<8x4xf32>
    %c0_1 = arith.constant 0 : index
    %c0_2 = arith.constant 0 : index
    %1 = vector.load %arg1[%c0_1, %c0_2] : memref<8x32xf32, #tpu.memory_space<vmem>>, vector<8x32xf32>
    %c0_3 = arith.constant 0 : index
    %c0_4 = arith.constant 0 : index
    %2 = vector.load %arg5[%c0_3, %c0_4] : memref<108x64xf32, #tpu.memory_space<vmem>>, vector<32x64xf32>
    %cst = arith.constant dense<0.000000e+00> : vector<8x64xf32>
    %3 = tpu.matmul %1, %2, %cst {dimension_numbers = #tpu.dot_dimension_numbers<[1], [0], [0], [1], [0, 0, 1, 1], [], []>} : vector<8x32xf32>, vector<32x64xf32>, vector<8x64xf32> -> vector<8x64xf32>
    %c0_5 = arith.constant 0 : index
    %c0_6 = arith.constant 0 : index
    %4 = vector.load %arg2[%c0_5, %c0_6] : memref<8x64xf32, #tpu.memory_space<vmem>>, vector<8x64xf32>
    %c32 = arith.constant 32 : index
    %c0_7 = arith.constant 0 : index
    %5 = vector.load %arg5[%c32, %c0_7] : memref<108x64xf32, #tpu.memory_space<vmem>>, vector<64x64xf32>
    %cst_8 = arith.constant dense<0.000000e+00> : vector<8x64xf32>
    %6 = tpu.matmul %4, %5, %cst_8 {dimension_numbers = #tpu.dot_dimension_numbers<[1], [0], [0], [1], [0, 0, 1, 1], [], []>} : vector<8x64xf32>, vector<64x64xf32>, vector<8x64xf32> -> vector<8x64xf32>
    %7 = arith.addf %3, %6 : vector<8x64xf32>
    %c0_9 = arith.constant 0 : index
    %c0_10 = arith.constant 0 : index
    %8 = vector.load %arg3[%c0_9, %c0_10] : memref<8x8xf32, #tpu.memory_space<vmem>>, vector<8x8xf32>
    %c96 = arith.constant 96 : index
    %c0_11 = arith.constant 0 : index
    %9 = vector.load %arg5[%c96, %c0_11] : memref<108x64xf32, #tpu.memory_space<vmem>>, vector<8x64xf32>
    %cst_12 = arith.constant dense<0.000000e+00> : vector<8x64xf32>
    %10 = tpu.matmul %8, %9, %cst_12 {dimension_numbers = #tpu.dot_dimension_numbers<[1], [0], [0], [1], [0, 0, 1, 1], [], []>} : vector<8x8xf32>, vector<8x64xf32>, vector<8x64xf32> -> vector<8x64xf32>
    %11 = arith.addf %7, %10 : vector<8x64xf32>
    %c104 = arith.constant 104 : index
    %c0_13 = arith.constant 0 : index
    %12 = vector.load %arg5[%c104, %c0_13] : memref<108x64xf32, #tpu.memory_space<vmem>>, vector<4x64xf32>
    %cst_14 = arith.constant dense<0.000000e+00> : vector<8x64xf32>
    %13 = tpu.matmul %0, %12, %cst_14 {dimension_numbers = #tpu.dot_dimension_numbers<[1], [0], [0], [1], [0, 0, 1, 1], [], []>} : vector<8x4xf32>, vector<4x64xf32>, vector<8x64xf32> -> vector<8x64xf32>
    %14 = arith.addf %11, %13 : vector<8x64xf32>
    %c0_15 = arith.constant 0 : index
    %c0_16 = arith.constant 0 : index
    %15 = vector.load %arg6[%c0_15, %c0_16] : memref<1x64xf32, #tpu.memory_space<vmem>>, vector<1x64xf32>
    %16 = vector.broadcast %15 : vector<1x64xf32> to vector<8x64xf32>
    %17 = arith.addf %14, %16 : vector<8x64xf32>
    %cst_17 = arith.constant 0.000000e+00 : f32
    %18 = vector.broadcast %cst_17 : f32 to vector<8x64xf32>
    %19 = arith.maximumf %17, %18 : vector<8x64xf32>
    %c0_18 = arith.constant 0 : index
    %c0_19 = arith.constant 0 : index
    %20 = vector.load %arg7[%c0_18, %c0_19] : memref<64x5xf32, #tpu.memory_space<vmem>>, vector<64x5xf32>
    %cst_20 = arith.constant dense<0.000000e+00> : vector<8x5xf32>
    %21 = tpu.matmul %19, %20, %cst_20 {dimension_numbers = #tpu.dot_dimension_numbers<[1], [0], [0], [1], [0, 0, 1, 1], [], []>} : vector<8x64xf32>, vector<64x5xf32>, vector<8x5xf32> -> vector<8x5xf32>
    %c0_21 = arith.constant 0 : index
    %c0_22 = arith.constant 0 : index
    %22 = vector.load %arg8[%c0_21, %c0_22] : memref<1x5xf32, #tpu.memory_space<vmem>>, vector<1x5xf32>
    %23 = vector.broadcast %22 : vector<1x5xf32> to vector<8x5xf32>
    %24 = arith.addf %21, %23 : vector<8x5xf32>
    %25 = vector.extract_strided_slice %24 {offsets = [0, 0], sizes = [8, 4], strides = [1, 1]} : vector<8x5xf32> to vector<8x4xf32>
    %26 = math.tanh %25 : vector<8x4xf32>
    %27 = vector.extract_strided_slice %24 {offsets = [0, 4], sizes = [8, 1], strides = [1, 1]} : vector<8x5xf32> to vector<8x1xf32>
    %c0_23 = arith.constant 0 : index
    %c0_24 = arith.constant 0 : index
    %28 = vector.load %arg9[%c0_23, %c0_24] : memref<1x4xf32, #tpu.memory_space<vmem>>, vector<1x4xf32>
    %cst_25 = arith.constant 5.000000e-02 : f32
    %cst_26 = arith.constant 1.000000e+00 : f32
    %29 = vector.broadcast %cst_25 : f32 to vector<1x4xf32>
    %30 = arith.maximumf %29, %28 : vector<1x4xf32>
    %31 = vector.broadcast %cst_26 : f32 to vector<1x4xf32>
    %32 = arith.minimumf %31, %30 : vector<1x4xf32>
    %33 = math.log %32 : vector<1x4xf32>
    %34 = arith.mulf %32, %32 : vector<1x4xf32>
    %cst_27 = arith.constant -5.000000e-01 : f32
    %35 = vector.broadcast %cst_27 : f32 to vector<1x4xf32>
    %36 = arith.divf %35, %34 : vector<1x4xf32>
    %37 = arith.subf %0, %26 : vector<8x4xf32>
    %38 = arith.mulf %37, %37 : vector<8x4xf32>
    %39 = vector.broadcast %36 : vector<1x4xf32> to vector<8x4xf32>
    %40 = arith.mulf %38, %39 : vector<8x4xf32>
    %cst_28 = arith.constant 0.918938517 : f32
    %41 = vector.broadcast %cst_28 : f32 to vector<1x4xf32>
    %42 = arith.addf %33, %41 : vector<1x4xf32>
    %43 = vector.broadcast %42 : vector<1x4xf32> to vector<8x4xf32>
    %44 = arith.subf %40, %43 : vector<8x4xf32>
    %c0_29 = arith.constant 0 : index
    %c0_30 = arith.constant 0 : index
    %45 = vector.load %arg10[%c0_29, %c0_30] : memref<8x4xf32, #tpu.memory_space<vmem>>, vector<8x4xf32>
    tpu.vector_store %arg10[%c0_29, %c0_30], %26 {strides = array<i32>} : memref<8x4xf32, #tpu.memory_space<vmem>>, vector<8x4xf32>,
    %c0_31 = arith.constant 0 : index
    %c0_32 = arith.constant 0 : index
    %46 = vector.load %arg11[%c0_31, %c0_32] : memref<8x4xf32, #tpu.memory_space<vmem>>, vector<8x4xf32>
    tpu.vector_store %arg11[%c0_31, %c0_32], %44 {strides = array<i32>} : memref<8x4xf32, #tpu.memory_space<vmem>>, vector<8x4xf32>,
    %c0_33 = arith.constant 0 : index
    %c0_34 = arith.constant 0 : index
    %47 = vector.load %arg12[%c0_33, %c0_34] : memref<8x1xf32, #tpu.memory_space<vmem>>, vector<8x1xf32>
    tpu.vector_store %arg12[%c0_33, %c0_34], %27 {strides = array<i32>} : memref<8x1xf32, #tpu.memory_space<vmem>>, vector<8x1xf32>,
    return
  }
  func.func @transform_0(%arg0: i32) -> (i32, i32) {
    %c0_i32 = arith.constant 0 : i32
    %c0_i32_0 = arith.constant 0 : i32
    return %arg0, %c0_i32 : i32, i32
  }
  func.func @transform_1(%arg0: i32) -> (i32, i32) {
    %c0_i32 = arith.constant 0 : i32
    %c0_i32_0 = arith.constant 0 : i32
    return %arg0, %c0_i32 : i32, i32
  }
  func.func @transform_2(%arg0: i32) -> (i32, i32) {
    %c0_i32 = arith.constant 0 : i32
    %c0_i32_0 = arith.constant 0 : i32
    return %arg0, %c0_i32 : i32, i32
  }
  func.func @transform_3(%arg0: i32) -> (i32, i32) {
    %c0_i32 = arith.constant 0 : i32
    %c0_i32_0 = arith.constant 0 : i32
    return %arg0, %c0_i32 : i32, i32
  }
  func.func @transform_4(%arg0: i32) -> (i32, i32) {
    %c0_i32 = arith.constant 0 : i32
    %c0_i32_0 = arith.constant 0 : i32
    %c0_i32_1 = arith.constant 0 : i32
    return %c0_i32, %c0_i32_0 : i32, i32
  }
  func.func @transform_5(%arg0: i32) -> (i32, i32) {
    %c0_i32 = arith.constant 0 : i32
    %c0_i32_0 = arith.constant 0 : i32
    %c0_i32_1 = arith.constant 0 : i32
    return %c0_i32, %c0_i32_0 : i32, i32
  }
  func.func @transform_6(%arg0: i32) -> (i32, i32) {
    %c0_i32 = arith.constant 0 : i32
    %c0_i32_0 = arith.constant 0 : i32
    %c0_i32_1 = arith.constant 0 : i32
    return %c0_i32, %c0_i32_0 : i32, i32
  }
  func.func @transform_7(%arg0: i32) -> (i32, i32) {
    %c0_i32 = arith.constant 0 : i32
    %c0_i32_0 = arith.constant 0 : i32
    %c0_i32_1 = arith.constant 0 : i32
    return %c0_i32, %c0_i32_0 : i32, i32
  }
  func.func @transform_8(%arg0: i32) -> (i32, i32) {
    %c0_i32 = arith.constant 0 : i32
    %c0_i32_0 = arith.constant 0 : i32
    %c0_i32_1 = arith.constant 0 : i32
    return %c0_i32, %c0_i32_0 : i32, i32
  }
  func.func @transform_9(%arg0: i32) -> (i32, i32) {
    %c0_i32 = arith.constant 0 : i32
    %c0_i32_0 = arith.constant 0 : i32
    return %arg0, %c0_i32 : i32, i32
  }
  func.func @transform_10(%arg0: i32) -> (i32, i32) {
    %c0_i32 = arith.constant 0 : i32
    %c0_i32_0 = arith.constant 0 : i32
    return %arg0, %c0_i32 : i32, i32
  }
  func.func @transform_11(%arg0: i32) -> (i32, i32) {
    %c0_i32 = arith.constant 0 : i32
    %c0_i32_0 = arith.constant 0 : i32
    return %arg0, %c0_i32 : i32, i32
  }
}

</mosaic_0001>

<llo_original>
// kernel: tpu_custom_call.1
$region0: #{tpu_custom_call.1}
  #allocation0 [shape = 'u32[]', space=smem, size = 0x4, offset = 0x4, fixed_abs, tag = 'smem constant byte address 0x4 - core index']
  #allocation1 [shape = 'u32[144,128]{1,0:T(1,128)}', space=vmem, size = 0x12000, scoped, tag = 'internal scratch']
  %s0 = inlined_call_operand.vmem [shape: f32[8,32], index: 0, kind: input, shape index: {}]
  %s1 = inlined_call_operand.vmem [shape: f32[8,64], index: 1, kind: input, shape index: {}]
  %s2 = inlined_call_operand.vmem [shape: f32[8,8], index: 2, kind: input, shape index: {}]
  %s3 = inlined_call_operand.vmem [shape: f32[8,4], index: 3, kind: input, shape index: {}]
  %s4 = inlined_call_operand.vmem [shape: f32[108,64], index: 4, kind: input, shape index: {}]
  %s5 = inlined_call_operand.vmem [shape: f32[1,64], index: 5, kind: input, shape index: {}]
  %s6 = inlined_call_operand.vmem [shape: f32[64,5], index: 6, kind: input, shape index: {}]
  %s7 = inlined_call_operand.vmem [shape: f32[1,5], index: 7, kind: input, shape index: {}]
  %s8 = inlined_call_operand.vmem [shape: f32[1,4], index: 8, kind: input, shape index: {}]
  %s9 = inlined_call_operand.vmem [shape: f32[8,4], index: 9, kind: output, shape index: {0}]
  %s10 = inlined_call_operand.vmem [shape: f32[8,4], index: 10, kind: output, shape index: {1}]
  %s11 = inlined_call_operand.vmem [shape: f32[8,1], index: 11, kind: output, shape index: {2}]
  %12 = xla_tuple %s9, %s10, %s11
  %s13 = sld [smem:[#allocation0]]
  $region62: #{tpu_custom_call.1} parent=0
    _
  %s15 = ssub.s32 1, %s13
  %s16 = scalar_select 0, %s15, %s13
  // Predicated region
  $region2: #{tpu_custom_call.1} parent=0 // pred_check
    _
  $region3: #{tpu_custom_call.1} parent=0 // pred_check_branch
    %18 = sbr.rel (0) target = $region5
  $region4: #{tpu_custom_call.1} parent=0 // pred_region
    _
  $region5: #{tpu_custom_call.1} parent=0 // pred_fallthru
    _
  // Predicated region
  $region6: #{tpu_custom_call.1} parent=0 // pred_check
    _
  $region7: #{tpu_custom_call.1} parent=0 // pred_check_branch
    %20 = sbr.rel (0) target = $region9
  $region8: #{tpu_custom_call.1} parent=0 // pred_region
    _
  $region9: #{tpu_custom_call.1} parent=0 // pred_fallthru
    _
  // Predicated region
  $region10: #{tpu_custom_call.1} parent=0 // pred_check
    _
  $region11: #{tpu_custom_call.1} parent=0 // pred_check_branch
    %22 = sbr.rel (0) target = $region13
  $region12: #{tpu_custom_call.1} parent=0 // pred_region
    _
  $region13: #{tpu_custom_call.1} parent=0 // pred_fallthru
    _
  // Predicated region
  $region14: #{tpu_custom_call.1} parent=0 // pred_check
    _
  $region15: #{tpu_custom_call.1} parent=0 // pred_check_branch
    %24 = sbr.rel (0) target = $region17
  $region16: #{tpu_custom_call.1} parent=0 // pred_region
    _
  $region17: #{tpu_custom_call.1} parent=0 // pred_fallthru
    _
  // Predicated region
  $region18: #{tpu_custom_call.1} parent=0 // pred_check
    _
  $region19: #{tpu_custom_call.1} parent=0 // pred_check_branch
    %26 = sbr.rel (0) target = $region21
  $region20: #{tpu_custom_call.1} parent=0 // pred_region
    _
  $region21: #{tpu_custom_call.1} parent=0 // pred_fallthru
    _
  // Predicated region
  $region22: #{tpu_custom_call.1} parent=0 // pred_check
    _
  $region23: #{tpu_custom_call.1} parent=0 // pred_check_branch
    %28 = sbr.rel (0) target = $region25
  $region24: #{tpu_custom_call.1} parent=0 // pred_region
    _
  $region25: #{tpu_custom_call.1} parent=0 // pred_fallthru
    _
  // Predicated region
  $region26: #{tpu_custom_call.1} parent=0 // pred_check
    _
  $region27: #{tpu_custom_call.1} parent=0 // pred_check_branch
    %30 = sbr.rel (0) target = $region29
  $region28: #{tpu_custom_call.1} parent=0 // pred_region
    _
  $region29: #{tpu_custom_call.1} parent=0 // pred_fallthru
    _
  // Predicated region
  $region30: #{tpu_custom_call.1} parent=0 // pred_check
    _
  $region31: #{tpu_custom_call.1} parent=0 // pred_check_branch
    %32 = sbr.rel (0) target = $region33
  $region32: #{tpu_custom_call.1} parent=0 // pred_region
    _
  $region33: #{tpu_custom_call.1} parent=0 // pred_fallthru
    _
  // Predicated region
  $region34: #{tpu_custom_call.1} parent=0 // pred_check
    _
  $region35: #{tpu_custom_call.1} parent=0 // pred_check_branch
    %34 = sbr.rel (0) target = $region37
  $region36: #{tpu_custom_call.1} parent=0 // pred_region
    _
  $region37: #{tpu_custom_call.1} parent=0 // pred_fallthru
    _
  %v35 = vld [vmem:[%s3] sm:$0xff]
  %v36 = vld [vmem:[%s0] sm:$0xff]
  %v37 = vld [vmem:[%s4] sm:$0xff]
  %v38 = vld [vmem:[%s4 + $0x8] sm:$0xff]
  %v39 = vld [vmem:[%s4 + $0x10] sm:$0xff]
  %v40 = vld [vmem:[%s4 + $0x18] sm:$0xff]
  %v41 = vld [vmem:[%s1] sm:$0xff]
  %v42 = vld [vmem:[%s4 + $0x20] sm:$0xff]
  %v43 = vld [vmem:[%s4 + $0x28] sm:$0xff]
  %v44 = vld [vmem:[%s4 + $0x30] sm:$0xff]
  %v45 = vld [vmem:[%s4 + $0x38] sm:$0xff]
  %v46 = vld [vmem:[%s4 + $0x40] sm:$0xff]
  %v47 = vld [vmem:[%s4 + $0x48] sm:$0xff]
  %v48 = vld [vmem:[%s4 + $0x50] sm:$0xff]
  %v49 = vld [vmem:[%s4 + $0x58] sm:$0xff]
  %vm50 = vcmask 523264
  %v52 = vsel %vm50, %v41, 0
  %54 = vmatprep.subr.mxu0 0.0
  %55 = vmatpush1.msra.mxu0 %v42
  %56 = vmatprep.subr.mxu0 0.0
  %57 = vmatpush1.msra.mxu0 %v43
  %58 = vmatprep.subr.mxu0 0.0
  %59 = vmatpush1.msra.mxu0 %v44
  %60 = vmatprep.subr.mxu0 0.0
  %61 = vmatpush1.msra.mxu0 %v45
  %62 = vmatprep.subr.mxu0 0.0
  %63 = vmatpush1.msra.mxu0 %v46
  %64 = vmatprep.subr.mxu0 0.0
  %65 = vmatpush1.msra.mxu0 %v47
  %66 = vmatprep.subr.mxu0 0.0
  %67 = vmatpush1.msra.mxu0 %v48
  %68 = vmatprep.subr.mxu0 0.0
  %69 = vmatpush1.msra.mxu0 %v49
  %70 = vmatprep.subr.mxu0 0.0
  %71 = vmatpush1.msra.mxu0 0.0
  %72 = vmatprep.subr.mxu0 0.0
  %73 = vmatpush1.msra.mxu0 0.0
  %74 = vmatprep.subr.mxu0 0.0
  %75 = vmatpush1.msra.mxu0 0.0
  %76 = vmatprep.subr.mxu0 0.0
  %77 = vmatpush1.msra.mxu0 0.0
  %78 = vmatprep.subr.mxu0 0.0
  %79 = vmatpush1.msra.mxu0 0.0
  %80 = vmatprep.subr.mxu0 0.0
  %81 = vmatpush1.msra.mxu0 0.0
  %82 = vmatprep.subr.mxu0 0.0
  %83 = vmatpush1.msra.mxu0 0.0
  %84 = vmatprep.subr.mxu0 0.0
  %85 = vmatpush1.msra.mxu0 0.0
  %86 = vmatprep.subr.mxu0 0.0
  %87 = vmatpush1.msra.mxu0 0.0
  %88 = vmatprep.subr.mxu0 0.0
  %89 = vmatpush1.msra.mxu0 0.0
  %90 = vmatprep.subr.mxu0 0.0
  %91 = vmatpush1.msra.mxu0 0.0
  %92 = vmatprep.subr.mxu0 0.0
  %93 = vmatpush1.msra.mxu0 0.0
  %94 = vmatprep.subr.mxu0 0.0
  %95 = vmatpush1.msra.mxu0 0.0
  %96 = vmatprep.subr.mxu0 0.0
  %97 = vmatpush1.msra.mxu0 0.0
  %98 = vmatprep.subr.mxu0 0.0
  %99 = vmatpush1.msra.mxu0 0.0
  %100 = vmatprep.subr.mxu0 0.0
  %101 = vmatpush1.msra.mxu0 0.0
  %102 = vmatprep.subr.mxu0 0.0
  %103 = vmatpush1.msra.mxu0 0.0
  %104 = vmatprep.subr.mxu0 0.0
  %105 = vmatpush1.msra.mxu0 0.0
  %106 = vmatprep.subr.mxu0 0.0
  %107 = vmatpush1.msra.mxu0 0.0
  %108 = vmatprep.subr.mxu0 0.0
  %109 = vmatpush1.msra.mxu0 0.0
  %110 = vmatprep.subr.mxu0 0.0
  %111 = vmatpush1.msra.mxu0 0.0
  %112 = vmatprep.subr.mxu0 0.0
  %113 = vmatpush1.msra.mxu0 0.0
  %114 = vmatprep.subr.mxu0 0.0
  %115 = vmatpush1.msra.mxu0 0.0
  %116 = vmatprep.subr.mxu0 0.0
  %117 = vmatpush1.msra.mxu0 0.0
  %118 = vmatprep.mubr.f32.mxu0 0.0
  %119 = vmatmul.mubr.f32.gmra.mrb[0].mxu0 %v52
  %v120 = vpop.f32.mrb[0].mxu0
  %v121 = vadd.f32 0.0, %v120
  %v122 = vpop.f32.mrb[0].mxu0
  %123 = vdwg.mxu0
  %vm124 = vcmask 261120
  %v126 = vsel %vm124, %v36, 0
  %128 = vmatprep.subr.mxu0 0.0
  %129 = vmatpush1.msra.mxu0 %v37
  %130 = vmatprep.subr.mxu0 0.0
  %131 = vmatpush1.msra.mxu0 %v38
  %132 = vmatprep.subr.mxu0 0.0
  %133 = vmatpush1.msra.mxu0 %v39
  %134 = vmatprep.subr.mxu0 0.0
  %135 = vmatpush1.msra.mxu0 %v40
  %136 = vmatprep.subr.mxu0 0.0
  %137 = vmatpush1.msra.mxu0 0.0
  %138 = vmatprep.subr.mxu0 0.0
  %139 = vmatpush1.msra.mxu0 0.0
  %140 = vmatprep.subr.mxu0 0.0
  %141 = vmatpush1.msra.mxu0 0.0
  %142 = vmatprep.subr.mxu0 0.0
  %143 = vmatpush1.msra.mxu0 0.0
  %144 = vmatprep.subr.mxu0 0.0
  %145 = vmatpush1.msra.mxu0 0.0
  %146 = vmatprep.subr.mxu0 0.0
  %147 = vmatpush1.msra.mxu0 0.0
  %148 = vmatprep.subr.mxu0 0.0
  %149 = vmatpush1.msra.mxu0 0.0
  %150 = vmatprep.subr.mxu0 0.0
  %151 = vmatpush1.msra.mxu0 0.0
  %152 = vmatprep.subr.mxu0 0.0
  %153 = vmatpush1.msra.mxu0 0.0
  %154 = vmatprep.subr.mxu0 0.0
  %155 = vmatpush1.msra.mxu0 0.0
  %156 = vmatprep.subr.mxu0 0.0
  %157 = vmatpush1.msra.mxu0 0.0
  %158 = vmatprep.subr.mxu0 0.0
  %159 = vmatpush1.msra.mxu0 0.0
  %160 = vmatprep.subr.mxu0 0.0
  %161 = vmatpush1.msra.mxu0 0.0
  %162 = vmatprep.subr.mxu0 0.0
  %163 = vmatpush1.msra.mxu0 0.0
  %164 = vmatprep.subr.mxu0 0.0
  %165 = vmatpush1.msra.mxu0 0.0
  %166 = vmatprep.subr.mxu0 0.0
  %167 = vmatpush1.msra.mxu0 0.0
  %168 = vmatprep.subr.mxu0 0.0
  %169 = vmatpush1.msra.mxu0 0.0
  %170 = vmatprep.subr.mxu0 0.0
  %171 = vmatpush1.msra.mxu0 0.0
  %172 = vmatprep.subr.mxu0 0.0
  %173 = vmatpush1.msra.mxu0 0.0
  %174 = vmatprep.subr.mxu0 0.0
  %175 = vmatpush1.msra.mxu0 0.0
  %176 = vmatprep.subr.mxu0 0.0
  %177 = vmatpush1.msra.mxu0 0.0
  %178 = vmatprep.subr.mxu0 0.0
  %179 = vmatpush1.msra.mxu0 0.0
  %180 = vmatprep.subr.mxu0 0.0
  %181 = vmatpush1.msra.mxu0 0.0
  %182 = vmatprep.subr.mxu0 0.0
  %183 = vmatpush1.msra.mxu0 0.0
  %184 = vmatprep.subr.mxu0 0.0
  %185 = vmatpush1.msra.mxu0 0.0
  %186 = vmatprep.subr.mxu0 0.0
  %187 = vmatpush1.msra.mxu0 0.0
  %188 = vmatprep.subr.mxu0 0.0
  %189 = vmatpush1.msra.mxu0 0.0
  %190 = vmatprep.subr.mxu0 0.0
  %191 = vmatpush1.msra.mxu0 0.0
  %192 = vmatprep.mubr.f32.mxu0 0.0
  %193 = vmatmul.mubr.f32.gmra.mrb[0].mxu0 %v126
  %v194 = vpop.f32.mrb[0].mxu0
  %v195 = vadd.f32 %v121, %v194
  %v196 = vpop.f32.mrb[0].mxu0
  %197 = vdwg.mxu0
  %v198 = vld [vmem:[%s2] sm:$0xff]
  %v199 = vld [vmem:[%s4 + $0x60] sm:$0xff]
  %vm200 = vcmask 64512
  %v202 = vsel %vm200, %v198, 0
  %204 = vmatprep.subr.mxu0 0.0
  %205 = vmatpush1.msra.mxu0 %v199
  %206 = vmatprep.subr.mxu0 0.0
  %207 = vmatpush1.msra.mxu0 0.0
  %208 = vmatprep.subr.mxu0 0.0
  %209 = vmatpush1.msra.mxu0 0.0
  %210 = vmatprep.subr.mxu0 0.0
  %211 = vmatpush1.msra.mxu0 0.0
  %212 = vmatprep.subr.mxu0 0.0
  %213 = vmatpush1.msra.mxu0 0.0
  %214 = vmatprep.subr.mxu0 0.0
  %215 = vmatpush1.msra.mxu0 0.0
  %216 = vmatprep.subr.mxu0 0.0
  %217 = vmatpush1.msra.mxu0 0.0
  %218 = vmatprep.subr.mxu0 0.0
  %219 = vmatpush1.msra.mxu0 0.0
  %220 = vmatprep.subr.mxu0 0.0
  %221 = vmatpush1.msra.mxu0 0.0
  %222 = vmatprep.subr.mxu0 0.0
  %223 = vmatpush1.msra.mxu0 0.0
  %224 = vmatprep.subr.mxu0 0.0
  %225 = vmatpush1.msra.mxu0 0.0
  %226 = vmatprep.subr.mxu0 0.0
  %227 = vmatpush1.msra.mxu0 0.0
  %228 = vmatprep.subr.mxu0 0.0
  %229 = vmatpush1.msra.mxu0 0.0
  %230 = vmatprep.subr.mxu0 0.0
  %231 = vmatpush1.msra.mxu0 0.0
  %232 = vmatprep.subr.mxu0 0.0
  %233 = vmatpush1.msra.mxu0 0.0
  %234 = vmatprep.subr.mxu0 0.0
  %235 = vmatpush1.msra.mxu0 0.0
  %236 = vmatprep.subr.mxu0 0.0
  %237 = vmatpush1.msra.mxu0 0.0
  %238 = vmatprep.subr.mxu0 0.0
  %239 = vmatpush1.msra.mxu0 0.0
  %240 = vmatprep.subr.mxu0 0.0
  %241 = vmatpush1.msra.mxu0 0.0
  %242 = vmatprep.subr.mxu0 0.0
  %243 = vmatpush1.msra.mxu0 0.0
  %244 = vmatprep.subr.mxu0 0.0
  %245 = vmatpush1.msra.mxu0 0.0
  %246 = vmatprep.subr.mxu0 0.0
  %247 = vmatpush1.msra.mxu0 0.0
  %248 = vmatprep.subr.mxu0 0.0
  %249 = vmatpush1.msra.mxu0 0.0
  %250 = vmatprep.subr.mxu0 0.0
  %251 = vmatpush1.msra.mxu0 0.0
  %252 = vmatprep.subr.mxu0 0.0
  %253 = vmatpush1.msra.mxu0 0.0
  %254 = vmatprep.subr.mxu0 0.0
  %255 = vmatpush1.msra.mxu0 0.0
  %256 = vmatprep.subr.mxu0 0.0
  %257 = vmatpush1.msra.mxu0 0.0
  %258 = vmatprep.subr.mxu0 0.0
  %259 = vmatpush1.msra.mxu0 0.0
  %260 = vmatprep.subr.mxu0 0.0
  %261 = vmatpush1.msra.mxu0 0.0
  %262 = vmatprep.subr.mxu0 0.0
  %263 = vmatpush1.msra.mxu0 0.0
  %264 = vmatprep.subr.mxu0 0.0
  %265 = vmatpush1.msra.mxu0 0.0
  %266 = vmatprep.subr.mxu0 0.0
  %267 = vmatpush1.msra.mxu0 0.0
  %268 = vmatprep.mubr.f32.mxu0 0.0
  %269 = vmatmul.mubr.f32.gmra.mrb[0].mxu0 %v202
  %v270 = vpop.f32.mrb[0].mxu0
  %v271 = vadd.f32 0.0, %v270
  %v272 = vpop.f32.mrb[0].mxu0
  %273 = vdwg.mxu0
  %v274 = vadd.f32 %v195, %v271
  %v275 = vld [vmem:[%s4 + $0x68] sm:$0xf]
  %vm276 = vcmask 31744
  %v278 = vsel %vm276, %v35, 0
  %vm280 = vcmask 1043456
  %v282 = vsel %vm280, %v275, 0
  %284 = vmatprep.subr.mxu0 0.0
  %285 = vmatpush1.msra.mxu0 %v282
  %286 = vmatprep.subr.mxu0 0.0
  %287 = vmatpush1.msra.mxu0 0.0
  %288 = vmatprep.subr.mxu0 0.0
  %289 = vmatpush1.msra.mxu0 0.0
  %290 = vmatprep.subr.mxu0 0.0
  %291 = vmatpush1.msra.mxu0 0.0
  %292 = vmatprep.subr.mxu0 0.0
  %293 = vmatpush1.msra.mxu0 0.0
  %294 = vmatprep.subr.mxu0 0.0
  %295 = vmatpush1.msra.mxu0 0.0
  %296 = vmatprep.subr.mxu0 0.0
  %297 = vmatpush1.msra.mxu0 0.0
  %298 = vmatprep.subr.mxu0 0.0
  %299 = vmatpush1.msra.mxu0 0.0
  %300 = vmatprep.subr.mxu0 0.0
  %301 = vmatpush1.msra.mxu0 0.0
  %302 = vmatprep.subr.mxu0 0.0
  %303 = vmatpush1.msra.mxu0 0.0
  %304 = vmatprep.subr.mxu0 0.0
  %305 = vmatpush1.msra.mxu0 0.0
  %306 = vmatprep.subr.mxu0 0.0
  %307 = vmatpush1.msra.mxu0 0.0
  %308 = vmatprep.subr.mxu0 0.0
  %309 = vmatpush1.msra.mxu0 0.0
  %310 = vmatprep.subr.mxu0 0.0
  %311 = vmatpush1.msra.mxu0 0.0
  %312 = vmatprep.subr.mxu0 0.0
  %313 = vmatpush1.msra.mxu0 0.0
  %314 = vmatprep.subr.mxu0 0.0
  %315 = vmatpush1.msra.mxu0 0.0
  %316 = vmatprep.subr.mxu0 0.0
  %317 = vmatpush1.msra.mxu0 0.0
  %318 = vmatprep.subr.mxu0 0.0
  %319 = vmatpush1.msra.mxu0 0.0
  %320 = vmatprep.subr.mxu0 0.0
  %321 = vmatpush1.msra.mxu0 0.0
  %322 = vmatprep.subr.mxu0 0.0
  %323 = vmatpush1.msra.mxu0 0.0
  %324 = vmatprep.subr.mxu0 0.0
  %325 = vmatpush1.msra.mxu0 0.0
  %326 = vmatprep.subr.mxu0 0.0
  %327 = vmatpush1.msra.mxu0 0.0
  %328 = vmatprep.subr.mxu0 0.0
  %329 = vmatpush1.msra.mxu0 0.0
  %330 = vmatprep.subr.mxu0 0.0
  %331 = vmatpush1.msra.mxu0 0.0
  %332 = vmatprep.subr.mxu0 0.0
  %333 = vmatpush1.msra.mxu0 0.0
  %334 = vmatprep.subr.mxu0 0.0
  %335 = vmatpush1.msra.mxu0 0.0
  %336 = vmatprep.subr.mxu0 0.0
  %337 = vmatpush1.msra.mxu0 0.0
  %338 = vmatprep.subr.mxu0 0.0
  %339 = vmatpush1.msra.mxu0 0.0
  %340 = vmatprep.subr.mxu0 0.0
  %341 = vmatpush1.msra.mxu0 0.0
  %342 = vmatprep.subr.mxu0 0.0
  %343 = vmatpush1.msra.mxu0 0.0
  %344 = vmatprep.subr.mxu0 0.0
  %345 = vmatpush1.msra.mxu0 0.0
  %346 = vmatprep.subr.mxu0 0.0
  %347 = vmatpush1.msra.mxu0 0.0
  %348 = vmatprep.mubr.f32.mxu0 0.0
  %349 = vmatmul.mubr.f32.gmra.mrb[0].mxu0 %v278
  %v350 = vpop.f32.mrb[0].mxu0
  %v351 = vadd.f32 0.0, %v350
  %v352 = vpop.f32.mrb[0].mxu0
  %353 = vdwg.mxu0
  %v354 = vadd.f32 %v274, %v351
  %v355 = vld [vmem:[%s5] sm:$0x1]
  %v357 = vlaneseq
  %v358 = vshrl.u32 %v357, 7
  %v359 = vsub.s32 0, %v358
  %v360 = vrot.slane %v355, %v359
  %v362 = vadd.f32 %v354, %v360
  %v363 = vmax.f32 %v362, 0.0
  %v364 = vld [vmem:[%s6] sm:$0xff]
  %v365 = vld [vmem:[%s6 + $0x8] sm:$0xff]
  %v366 = vld [vmem:[%s6 + $0x10] sm:$0xff]
  %v367 = vld [vmem:[%s6 + $0x18] sm:$0xff]
  %v368 = vld [vmem:[%s6 + $0x20] sm:$0xff]
  %v369 = vld [vmem:[%s6 + $0x28] sm:$0xff]
  %v370 = vld [vmem:[%s6 + $0x30] sm:$0xff]
  %v371 = vld [vmem:[%s6 + $0x38] sm:$0xff]
  %v372 = vld [vmem:[%s7] sm:$0x1]
  %v374 = vlaneseq
  %v375 = vshrl.u32 %v374, 7
  %v376 = vsub.s32 0, %v375
  %v377 = vrot.slane %v372, %v376
  %v380 = vsel %vm50, %v363, 0
  %382 = vmatprep.subr.mxu0 0.0
  %383 = vmatpush1.msra.mxu0 %v364
  %384 = vmatprep.subr.mxu0 0.0
  %385 = vmatpush1.msra.mxu0 %v365
  %386 = vmatprep.subr.mxu0 0.0
  %387 = vmatpush1.msra.mxu0 %v366
  %388 = vmatprep.subr.mxu0 0.0
  %389 = vmatpush1.msra.mxu0 %v367
  %390 = vmatprep.subr.mxu0 0.0
  %391 = vmatpush1.msra.mxu0 %v368
  %392 = vmatprep.subr.mxu0 0.0
  %393 = vmatpush1.msra.mxu0 %v369
  %394 = vmatprep.subr.mxu0 0.0
  %395 = vmatpush1.msra.mxu0 %v370
  %396 = vmatprep.subr.mxu0 0.0
  %397 = vmatpush1.msra.mxu0 %v371
  %398 = vmatprep.subr.mxu0 0.0
  %399 = vmatpush1.msra.mxu0 0.0
  %400 = vmatprep.subr.mxu0 0.0
  %401 = vmatpush1.msra.mxu0 0.0
  %402 = vmatprep.subr.mxu0 0.0
  %403 = vmatpush1.msra.mxu0 0.0
  %404 = vmatprep.subr.mxu0 0.0
  %405 = vmatpush1.msra.mxu0 0.0
  %406 = vmatprep.subr.mxu0 0.0
  %407 = vmatpush1.msra.mxu0 0.0
  %408 = vmatprep.subr.mxu0 0.0
  %409 = vmatpush1.msra.mxu0 0.0
  %410 = vmatprep.subr.mxu0 0.0
  %411 = vmatpush1.msra.mxu0 0.0
  %412 = vmatprep.subr.mxu0 0.0
  %413 = vmatpush1.msra.mxu0 0.0
  %414 = vmatprep.subr.mxu0 0.0
  %415 = vmatpush1.msra.mxu0 0.0
  %416 = vmatprep.subr.mxu0 0.0
  %417 = vmatpush1.msra.mxu0 0.0
  %418 = vmatprep.subr.mxu0 0.0
  %419 = vmatpush1.msra.mxu0 0.0
  %420 = vmatprep.subr.mxu0 0.0
  %421 = vmatpush1.msra.mxu0 0.0
  %422 = vmatprep.subr.mxu0 0.0
  %423 = vmatpush1.msra.mxu0 0.0
  %424 = vmatprep.subr.mxu0 0.0
  %425 = vmatpush1.msra.mxu0 0.0
  %426 = vmatprep.subr.mxu0 0.0
  %427 = vmatpush1.msra.mxu0 0.0
  %428 = vmatprep.subr.mxu0 0.0
  %429 = vmatpush1.msra.mxu0 0.0
  %430 = vmatprep.subr.mxu0 0.0
  %431 = vmatpush1.msra.mxu0 0.0
  %432 = vmatprep.subr.mxu0 0.0
  %433 = vmatpush1.msra.mxu0 0.0
  %434 = vmatprep.subr.mxu0 0.0
  %435 = vmatpush1.msra.mxu0 0.0
  %436 = vmatprep.subr.mxu0 0.0
  %437 = vmatpush1.msra.mxu0 0.0
  %438 = vmatprep.subr.mxu0 0.0
  %439 = vmatpush1.msra.mxu0 0.0
  %440 = vmatprep.subr.mxu0 0.0
  %441 = vmatpush1.msra.mxu0 0.0
  %442 = vmatprep.subr.mxu0 0.0
  %443 = vmatpush1.msra.mxu0 0.0
  %444 = vmatprep.subr.mxu0 0.0
  %445 = vmatpush1.msra.mxu0 0.0
  %446 = vmatprep.mubr.f32.mxu0 0.0
  %447 = vmatmul.mubr.f32.gmra.mrb[0].mxu0 %v380
  %v448 = vpop.f32.mrb[0].mxu0
  %v449 = vadd.f32 %v377, %v448
  %v450 = vpop.f32.mrb[0].mxu0
  %451 = vdwg.mxu0
  %v452 = vtanh.pop %v449
  %v453 = vld [vmem:[%s8] sm:$0x1]
  %v454 = vmax.f32 %v453, 0.05
  %v455 = vmin.f32 %v454, 1.0
  %v456 = vlog2.pop %v455
  %v457 = vmul.f32 %v456, 0.6931472
  %v458 = vmul.f32 %v455, %v455
  %v459 = vrcp.pop %v458
  %v460 = vmul.f32 -0.5, %v459
  %v461 = vsub.f32 %v35, %v452
  %v462 = vmul.f32 %v461, %v461
  %v464 = vlaneseq
  %v465 = vshrl.u32 %v464, 7
  %v466 = vsub.s32 0, %v465
  %v467 = vrot.slane %v460, %v466
  %v469 = vmul.f32 %v462, %v467
  %v470 = vadd.f32 %v457, 0.9189385
  %v472 = vlaneseq
  %v473 = vshrl.u32 %v472, 7
  %v474 = vsub.s32 0, %v473
  %v475 = vrot.slane %v470, %v474
  %v477 = vsub.f32 %v469, %v475
  %478 = vst.msk [vmem:[%s9] sm:$0xff] %vm276, %v452
  %479 = vst.msk [vmem:[%s10] sm:$0xff] %vm276, %v477
  %481 = vrot.lane.b32.xlu0 %v449, 124
  %v482 = vpop.permute.xlu0 %481
  %vm484 = vcmask 7168
  %485 = vst.msk [vmem:[%s11] sm:$0xff] %vm484, %v482
  // Predicated region
  $region38: #{tpu_custom_call.1} parent=0 // pred_check
    _
  $region39: #{tpu_custom_call.1} parent=0 // pred_check_branch
    %487 = sbr.rel (0) target = $region41
  $region40: #{tpu_custom_call.1} parent=0 // pred_region
    _
  $region41: #{tpu_custom_call.1} parent=0 // pred_fallthru
    _
  // Predicated region
  $region42: #{tpu_custom_call.1} parent=0 // pred_check
    _
  $region43: #{tpu_custom_call.1} parent=0 // pred_check_branch
    %489 = sbr.rel (0) target = $region45
  $region44: #{tpu_custom_call.1} parent=0 // pred_region
    _
  $region45: #{tpu_custom_call.1} parent=0 // pred_fallthru
    _
  // Predicated region
  $region46: #{tpu_custom_call.1} parent=0 // pred_check
    _
  $region47: #{tpu_custom_call.1} parent=0 // pred_check_branch
    %491 = sbr.rel (0) target = $region49
  $region48: #{tpu_custom_call.1} parent=0 // pred_region
    _
  $region49: #{tpu_custom_call.1} parent=0 // pred_fallthru
    _
  // Predicated region
  $region50: #{tpu_custom_call.1} parent=0 // pred_check
    _
  $region51: #{tpu_custom_call.1} parent=0 // pred_check_branch
    %493 = sbr.rel (0) target = $region53
  $region52: #{tpu_custom_call.1} parent=0 // pred_region
    _
  $region53: #{tpu_custom_call.1} parent=0 // pred_fallthru
    _
  // Predicated region
  $region54: #{tpu_custom_call.1} parent=0 // pred_check
    _
  $region55: #{tpu_custom_call.1} parent=0 // pred_check_branch
    %495 = sbr.rel (0) target = $region57
  $region56: #{tpu_custom_call.1} parent=0 // pred_region
    _
  $region57: #{tpu_custom_call.1} parent=0 // pred_fallthru
    _
  // Predicated region
  $region58: #{tpu_custom_call.1} parent=0 // pred_check
    _
  $region59: #{tpu_custom_call.1} parent=0 // pred_check_branch
    %497 = sbr.rel (0) target = $region61
  $region60: #{tpu_custom_call.1} parent=0 // pred_region
    _
  $region61: #{tpu_custom_call.1} parent=0 // pred_fallthru
    _

</llo_original>
